<compile_context>
chip_gen: v6e
topology: v6e:2x2x1
jax: 0.10.0
libtpu: 0.0.40
codegen_flags: <defaults>
</compile_context>

<pallas_src>
import math

import jax
import jax.numpy as jnp
from jax.experimental import pallas as pl
from jax.experimental.pallas import tpu as pltpu

_LANES = 128
_TILE_BYTES = 4 * 1024 * 1024  # ~4 MiB per input tile (dtype-aware row count)
_VMEM_LIMIT_BYTES = 32 << 20   # 4 live ~4 MiB buffers (in/out, double-buffered)


def _copy_kernel(x_ref, o_ref):
    # Pure element-stream copy: `view` does nothing to the data.
    o_ref[...] = x_ref[...]


def _pallas_identity_copy_2d(x2d):
    """Copy a (rows, 128) row-major slab through VMEM with a tiled Pallas kernel."""
    rows, lanes = x2d.shape
    assert lanes == _LANES
    itemsize = jnp.dtype(x2d.dtype).itemsize

    # Constant byte budget per tile, rounded down to a multiple of 32 rows so
    # the same kernel is layout-legal for f32 / bf16 / int8 sublane packing.
    budget_rows = max(32, (_TILE_BYTES // (_LANES * itemsize)) // 32 * 32)
    # Small inputs: one block equal to the full array (always layout-legal).
    # Large inputs: big row tiles; the ragged last block is masked by Pallas.
    tile_rows = rows if rows <= budget_rows else budget_rows

    grid = (pl.cdiv(rows, tile_rows),)
    nbytes = int(x2d.size) * itemsize
    return pl.pallas_call(
        _copy_kernel,
        out_shape=jax.ShapeDtypeStruct((rows, lanes), x2d.dtype),
        grid=grid,
        in_specs=[pl.BlockSpec((tile_rows, _LANES), lambda i: (i, 0))],
        out_specs=pl.BlockSpec((tile_rows, _LANES), lambda i: (i, 0)),
        cost_estimate=pl.CostEstimate(
            flops=0, transcendentals=0, bytes_accessed=2 * nbytes
        ),
        compiler_params=pltpu.CompilerParams(
            dimension_semantics=("parallel",),   # shard 1-D grid across TCs (v7x)
            vmem_limit_bytes=_VMEM_LIMIT_BYTES,  # fits 4x ~4 MiB live buffers on v5e too
        ),
    )(x2d)


def _resolve_shape(total, shape):
    """Resolve a torch-style view shape (supports a single -1)."""
    shape = list(shape)
    if shape.count(-1) > 1:
        raise ValueError("only one dimension can be inferred")
    if -1 in shape:
        known = 1
        for s in shape:
            if s != -1:
                known *= s
        idx = shape.index(-1)
        if known == 0 or total % known != 0:
            raise ValueError(f"cannot view {total} elements as {shape}")
        shape[idx] = total // known
    if math.prod(shape) != total:
        raise ValueError(f"shape {shape} is invalid for input of size {total}")
    return tuple(shape)


class View:
    """JAX/Pallas equivalent of the PyTorch `View` module.

    Default path is a free metadata reshape (exact `torch.Tensor.view`
    semantics, zero HBM traffic).  Set `force_materialize=True` to route the
    data through the Pallas streaming-copy kernel instead.
    """

    def __init__(self, shape, force_materialize=False):
        self.shape = tuple(shape)
        self.force_materialize = force_materialize

    def __call__(self, x):
        total = math.prod(x.shape)
        out_shape = _resolve_shape(total, self.shape)

        if (
            not self.force_materialize
            or total == 0
            or total % _LANES != 0
        ):
            # view/reshape is metadata-only; a copy kernel would only add a
            # 2x-nbytes HBM pass (or pad/slice traffic for ragged counts).
            # TODO(synk): masked ragged-tail kernel path intentionally omitted
            # (no benefit over the metadata-only reshape).
            return jnp.reshape(x, out_shape)

        rows = total // _LANES
        # Row-major flatten to a lane-dense (rows, 128) slab: pure metadata,
        # exactly the flat buffer order torch .view() is defined on.
        x2d = jnp.reshape(x, (rows, _LANES))
        y2d = _pallas_identity_copy_2d(x2d)
        return jnp.reshape(y2d, out_shape)


if __name__ == "__main__":
    key = jax.random.PRNGKey(0)
    x = jax.random.normal(key, (2, 4, 16, 16), dtype=jnp.float32)
    expected = jnp.reshape(x, (2, -1))

    # Default path: View((2, -1)) — free metadata reshape (the recommended path).
    y = View((2, -1))(x)
    jax.block_until_ready(y)
    assert y.shape == (2, 4 * 16 * 16), y.shape
    assert y.dtype == x.dtype
    assert bool(jnp.all(y == expected))

    # Forced-materialization path: runs the Pallas copy kernel once on the
    # same small input (total = 2048 elements -> a single (16, 128) block).
    y_mat = View((2, -1), force_materialize=True)(x)
    jax.block_until_ready(y_mat)
    assert y_mat.shape == (2, 4 * 16 * 16)
    assert bool(jnp.all(y_mat == expected))

    # Multi-grid-step + ragged-last-block coverage: 9000 rows > 8192-row f32
    # tile -> grid of 2 with a masked 808-row tail.
    x2 = jax.random.normal(key, (9000, 128), dtype=jnp.float32)
    y2 = View((-1, 4, 32), force_materialize=True)(x2)
    jax.block_until_ready(y2)
    assert y2.shape == (9000 * 128 // (4 * 32), 4, 32)
    assert bool(jnp.all(y2 == jnp.reshape(x2, (-1, 4, 32))))

    # Dtype-aware tiling check (bf16 uses 16384-row tiles; here a single block).
    x3 = jax.random.normal(key, (8, 16, 128), dtype=jnp.bfloat16)
    y3 = View((8, -1), force_materialize=True)(x3)
    jax.block_until_ready(y3)
    assert y3.shape == (8, 16 * 128)
    assert bool(jnp.all(y3 == jnp.reshape(x3, (8, -1))))

    print("KERNEL_OK")
</pallas_src>

<mosaic_0001>
module attributes {stable_mosaic.version = 11 : i64} {
  func.func @_copy_kernel(%arg0: i32, %arg1: memref<16x128xf32, #tpu.memory_space<vmem>>, %arg2: memref<16x128xf32, #tpu.memory_space<vmem>>) attributes {dimension_semantics = [#tpu.dimension_semantics<parallel>], iteration_bounds = array<i64: 1>, scalar_prefetch = 0 : i64, scratch_operands = 0 : i64, tpu.core_type = #tpu.core_type<tc>, window_params = [{transform_indices = @transform_0, window_bounds = array<i64: 16, 128>}, {transform_indices = @transform_1, window_bounds = array<i64: 16, 128>}]} {
    %c0 = arith.constant 0 : index
    %c0_0 = arith.constant 0 : index
    %0 = vector.load %arg1[%c0, %c0_0] : memref<16x128xf32, #tpu.memory_space<vmem>>, vector<16x128xf32>
    %c0_1 = arith.constant 0 : index
    %c0_2 = arith.constant 0 : index
    %1 = vector.load %arg2[%c0_1, %c0_2] : memref<16x128xf32, #tpu.memory_space<vmem>>, vector<16x128xf32>
    tpu.vector_store %arg2[%c0_1, %c0_2], %0 {strides = array<i32>} : memref<16x128xf32, #tpu.memory_space<vmem>>, vector<16x128xf32>,
    return
  }
  func.func @transform_0(%arg0: i32) -> (i32, i32) {
    %c0_i32 = arith.constant 0 : i32
    %c0_i32_0 = arith.constant 0 : i32
    return %arg0, %c0_i32 : i32, i32
  }
  func.func @transform_1(%arg0: i32) -> (i32, i32) {
    %c0_i32 = arith.constant 0 : i32
    %c0_i32_0 = arith.constant 0 : i32
    return %arg0, %c0_i32 : i32, i32
  }
}

</mosaic_0001>

<llo_original>
// kernel: tpu_custom_call.1
$region0: #{tpu_custom_call.1}
  #allocation0 [shape = 'u32[]', space=smem, size = 0x4, offset = 0x4, fixed_abs, tag = 'smem constant byte address 0x4 - core index']
  #allocation1 [shape = 'u32[144,128]{1,0:T(1,128)}', space=vmem, size = 0x12000, scoped, tag = 'internal scratch']
  %s0 = inlined_call_operand.hbm [shape: f32[16,128], index: 0, kind: input, shape index: {}]
  %s1 = inlined_call_operand.hbm [shape: f32[16,128], index: 1, kind: output, shape index: {}]
  %s2 = sld [smem:[#allocation0]]
  $region18: #{tpu_custom_call.1} parent=0
    _
  %s4 = ssub.s32 1, %s2
  %s5 = scalar_select 0, %s4, %s2
  $region1: #{tpu_custom_call.1} parent=0
    #allocation2 [shape = 'u8[8192]{0}', space=vmem, size = 0x2000, scoped, tag = 'input window, operand 0, single buffered']
    #allocation3 [shape = 's32[1]{0}', space=sflag, size = 0x4, scoped, tag = 'scoped memory for tpu_custom_call.1']
    #allocation4 [shape = 's32[1]{0}', space=sflag, size = 0x4, scoped, tag = 'scoped memory for tpu_custom_call.1']
    #allocation5 [shape = 'u8[8192]{0}', space=vmem, size = 0x2000, scoped, tag = 'output window, operand 0, single buffered']
    %6 = vsyncpa [#allocation3], 0
    %7 = vsyncpa [#allocation4], 0
    // Predicated region
    $region2: #{tpu_custom_call.1} parent=1 // pred_check
      _
    $region3: #{tpu_custom_call.1} parent=1 // pred_check_branch
      %9 = sbr.rel (0) target = $region5
    $region4: #{tpu_custom_call.1} parent=1 // pred_region
      %s11 = ssub.s32 256, 256
      %12 = vsyncadd [#allocation3], %s11
      %s13 = sshll.u32 [#allocation2], 4
      %s14 = int_to_ptr.vmem [resolvable:$true] %s13
      %19 = dma.hbm_to_vmem [thread:$0]  %s0, 256, %s14, [#allocation3], 128, 128, 8
    $region5: #{tpu_custom_call.1} parent=1 // pred_fallthru
      _
    // Predicated region
    $region6: #{tpu_custom_call.1} parent=1 // pred_check
      _
    $region7: #{tpu_custom_call.1} parent=1 // pred_check_branch
      %21 = sbr.rel (0) target = $region9
    $region8: #{tpu_custom_call.1} parent=1 // pred_region
      %22 = dma.done [#allocation3], 256
    $region9: #{tpu_custom_call.1} parent=1 // pred_fallthru
      _
    %v23 = vld [vmem:[#allocation2] sm:$0xff]
    %v24 = vld [vmem:[#allocation2 + $0x8] sm:$0xff]
    %25 = vst [vmem:[#allocation5] sm:$0xff] %v23
    %26 = vst [vmem:[#allocation5 + $0x8] sm:$0xff] %v24
    // Predicated region
    $region10: #{tpu_custom_call.1} parent=1 // pred_check
      _
    $region11: #{tpu_custom_call.1} parent=1 // pred_check_branch
      %28 = sbr.rel (0) target = $region13
    $region12: #{tpu_custom_call.1} parent=1 // pred_region
      %s30 = ssub.s32 256, 256
      %31 = vsyncadd [#allocation4], %s30
      %s32 = sshll.u32 [#allocation5], 4
      %s33 = int_to_ptr.vmem [resolvable:$true] %s32
      %38 = dma.vmem_to_hbm [thread:$0]  %s33, 256, %s1, [#allocation4], 128, 128, 8
    $region13: #{tpu_custom_call.1} parent=1 // pred_fallthru
      _
    // Predicated region
    $region14: #{tpu_custom_call.1} parent=1 // pred_check
      _
    $region15: #{tpu_custom_call.1} parent=1 // pred_check_branch
      %40 = sbr.rel (0) target = $region17
    $region16: #{tpu_custom_call.1} parent=1 // pred_region
      %41 = dma.done [#allocation4], 256
    $region17: #{tpu_custom_call.1} parent=1 // pred_fallthru
      _
    %42 = vsyncpa [#allocation3], 1
    %43 = vsyncpa [#allocation4], 1

</llo_original>
